<compile_context>
chip_gen: v5e
topology: v5e:2x2
jax: 0.10.0
libtpu: 0.0.40
codegen_flags: <defaults>
</compile_context>

<pallas_src>
import math

import jax
import jax.numpy as jnp
from jax.experimental import pallas as pl
from jax.experimental.pallas import tpu as pltpu


_TINY_BYTES = 512 << 10   # below this, grid-step overhead dominates: one block
_MIN_STEPS = 8            # target parallel grid steps (v7x megacore + pipelining)
_STEP_FACTOR = 6          # per-step VMEM ~= 6x the tile (in/out double-buffered
                          # + transpose/reshape temporaries)


def _cdiv(a, b):
    return -(-a // b)


def _lcm(a, b):
    return a * b // math.gcd(a, b)


def _vmem_params(requested_budget=None):
    """(per-step pipelined-buffer budget, scoped VMEM limit) per TPU generation."""
    try:
        cap = int(pltpu.get_tpu_info().vmem_capacity_bytes)
    except Exception:
        cap = 64 << 20   # conservative default: v7x has 64 MiB per TensorCore
    if requested_budget is None:
        # v5e/v6e (128 MiB): ~40 MiB of buffers; v7x (64 MiB): ~21 MiB.
        requested_budget = min(cap // 3, 40 << 20)
    vmem_limit = min((cap * 3) // 4, 100 << 20)
    return int(requested_budget), int(vmem_limit)


def _rotation_split(perm):
    """If perm is the cyclic rotation (s, s+1, ..., 0, ..., s-1) return s, else None."""
    n = len(perm)
    s = perm[0]
    if perm == tuple((s + k) % n for k in range(n)):
        return s
    return None


def _cost(x):
    return pl.CostEstimate(
        flops=0,
        transcendentals=0,
        bytes_accessed=2 * x.size * x.dtype.itemsize,
    )


def _sublane_align(itemsize):
    # f32 -> 8, bf16 -> 16, int8/fp8 -> 32 (sub-32-bit dtypes pack along sublanes)
    return 8 * max(1, 4 // itemsize)


def _best_tile(extent, cap, align):
    """Largest tile <= cap that is a multiple of `align`; prefers divisors of
    `extent` (no masked tail), else an aligned non-divisor (cdiv grid handles
    the tail).  Returns None if even `align` does not fit under `cap`."""
    cap = min(cap, extent)
    if cap < align:
        return None
    best_div = 0
    d = 1
    while d * d <= extent:          # O(sqrt) divisor enumeration, not step-by-1
        if extent % d == 0:
            for t in (d, extent // d):
                if t <= cap and t % align == 0 and t > best_div:
                    best_div = t
        d += 1
    non_div = (cap // align) * align
    if best_div and 2 * best_div >= non_div:
        return best_div
    return non_div if non_div else None


def _rotation_permute_a_tiled(x3, lead, a, b, B0, bR, out_shape, dt, max_ta,
                              cost, vmem_limit):
    """Deep fallback for rotations whose b axis cannot be tiled under the
    budget (e.g. W with no useful factor of 128): tile the `a` axis in
    lane-aligned chunks instead; output stays 4-D lane-dense."""
    ta = _best_tile(a, max_ta, 128)
    grid = (lead, _cdiv(a, ta))

    def kernel(x_ref, o_ref):
        t = jnp.swapaxes(x_ref[...], 1, 2)            # (1, b, ta)
        o_ref[...] = t.reshape(1, B0, bR, ta)

    out = pl.pallas_call(
        kernel,
        out_shape=jax.ShapeDtypeStruct((lead, B0, bR, a), dt),
        grid=grid,
        in_specs=[pl.BlockSpec((1, ta, b), lambda n, c: (n, c, 0))],
        out_specs=pl.BlockSpec((1, B0, bR, ta), lambda n, c: (n, 0, 0, c)),
        compiler_params=pltpu.CompilerParams(
            dimension_semantics=("parallel", "parallel"),
            vmem_limit_bytes=vmem_limit,
        ),
        cost_estimate=cost,
    )(x3)
    return out.reshape(out_shape)


def _rotation_permute(x, split, batched, buf_budget, vmem_limit):
    """Cyclic permutation: one 2-D XLU transpose of the merged (lead, a, b)
    view, tiled along the output-major axis B0 (and batched over lead), with
    lane-dense input/output slabs."""
    if batched:
        lead = x.shape[0]
        A, B = x.shape[1:split], x.shape[split:]
        out_shape = (lead,) + B + A
    else:
        lead = 1
        A, B = x.shape[:split], x.shape[split:]
        out_shape = B + A

    a, b = math.prod(A), math.prod(B)
    B0 = B[0]
    bR = b // B0
    dt = x.dtype
    itemsize = dt.itemsize
    cost = _cost(x)
    x3 = x.reshape(lead, a, b)          # contiguous merge in the wrapper (free)

    if x.size * itemsize <= _TINY_BYTES:
        # Tiny input: single-step kernel (grid-step overhead would dominate).
        def tiny_kernel(x_ref, o_ref):
            o_ref[...] = jnp.swapaxes(x_ref[...], 1, 2)

        out = pl.pallas_call(
            tiny_kernel,
            out_shape=jax.ShapeDtypeStruct((lead, b, a), dt),
            cost_estimate=cost,
        )(x3)
        return out.reshape(out_shape)

    # Output store layout: keep the minor dim lane-dense.
    if bR == 1:
        branch = "bR1"      # transpose result already is the output tile
    elif a % 128 == 0:
        branch = "wide"     # (bR, a) trailing dims: full-width stores as-is
    else:
        branch = "merge"    # merge (bR, a) -> bR*a so stores are not narrow/masked

    max_elems = max(1, buf_budget // (_STEP_FACTOR * itemsize))
    sub = _sublane_align(itemsize)

    # ---- choose the tile along B0 -------------------------------------------
    b0_steps_wanted = _cdiv(_MIN_STEPS, lead)
    max_t0_budget = max(1, max_elems // (a * bR))
    max_t0 = min(B0, max_t0_budget, max(1, B0 // b0_steps_wanted))

    t0 = None
    align = 1
    if max_t0 >= B0:
        t0 = B0
    else:
        lane = 128 // math.gcd(bR, 128)          # (t0*bR) % 128 for the in block
        s = 1 if branch == "wide" else sub       # t0 % sublane for the out block
        align = _lcm(lane, s)
        if align < B0:
            t0 = _best_tile(B0, max_t0, align)
            if t0 is None and align <= max_t0_budget:
                # the parallel-steps cap (not the budget) was binding: accept
                # fewer steps rather than violating alignment.
                t0 = _best_tile(B0, max_t0_budget, align)

    if t0 is None:
        if a * b <= max_elems:
            t0 = B0                              # full slab fits the budget
        else:
            # B0 tiling cannot satisfy both alignment and budget: tile `a`.
            max_ta = max(1, max_elems // b)
            if a >= 256 and max_ta >= 128:
                return _rotation_permute_a_tiled(
                    x3, lead, a, b, B0, bR, out_shape, dt, max_ta, cost,
                    vmem_limit)
            # TODO(synk): accept an over-budget tile (still under the raised
            # vmem_limit headroom); a fused relayout / two-pass split would be
            # needed to shrink it further for pathological shapes.
            t0 = B0 if align >= B0 else min(B0, align)

    # ---- batch lead slices when each per-lead slab is small ------------------
    tL = 1
    if t0 == B0 and lead > 1:
        tl_budget = max(1, max_elems // (a * b))
        tl_steps = max(1, lead // min(_MIN_STEPS, lead))
        tL = max(1, min(lead, tl_budget, tl_steps))

    grid = (_cdiv(lead, tL), _cdiv(B0, t0))
    in_spec = pl.BlockSpec((tL, a, t0 * bR), lambda n, j: (n, 0, j))

    if branch == "bR1":
        mid_shape = (lead, B0, a)
        out_spec = pl.BlockSpec((tL, t0, a), lambda n, j: (n, j, 0))
    elif branch == "wide":
        mid_shape = (lead, B0, bR, a)
        out_spec = pl.BlockSpec((tL, t0, bR, a), lambda n, j: (n, j, 0, 0))
    else:
        mid_shape = (lead, B0, bR * a)
        out_spec = pl.BlockSpec((tL, t0, bR * a), lambda n, j: (n, j, 0))

    def kernel(x_ref, o_ref):
        t = jnp.swapaxes(x_ref[...], 1, 2)    # (tL, t0*bR, a): one XLU transpose
        if branch == "bR1":
            o_ref[...] = t
        elif branch == "wide":
            o_ref[...] = t.reshape(tL, t0, bR, a)      # leading-dim split only
        else:
            # TODO(synk): on v7x this lane merge is a second relayout after the
            # transpose; a fused einshape-style relayout would remove it.
            o_ref[...] = t.reshape(tL, t0, bR * a)

    out = pl.pallas_call(
        kernel,
        out_shape=jax.ShapeDtypeStruct(mid_shape, dt),
        grid=grid,
        in_specs=[in_spec],
        out_specs=out_spec,
        compiler_params=pltpu.CompilerParams(
            dimension_semantics=("parallel", "parallel"),
            vmem_limit_bytes=vmem_limit,
        ),
        cost_estimate=cost,
    )(x3)
    # Final reshape is a contiguous split back to the true output shape (free).
    return out.reshape(out_shape)


def _leading_permute_swap(x, buf_budget, vmem_limit):
    """perm == (1, 0, 2, 3): swap the two leading axes.  Coarse (tN, tC, H, W)
    blocks instead of one tiny (1, 1, H, W) DMA per (n, c) pair; the in-kernel
    swapaxes(0, 1) only moves whole (H, W) slabs."""
    N, C, H, W = x.shape
    itemsize = x.dtype.itemsize
    slab = H * W
    if x.size * itemsize <= _TINY_BYTES:
        tC, tN = C, N
    else:
        max_elems = max(1, buf_budget // (_STEP_FACTOR * itemsize))
        tN = max(1, min(N, max_elems // slab))
        tC = max(1, min(C, max_elems // (tN * slab)))
        want_c = _cdiv(_MIN_STEPS, _cdiv(N, tN))   # enough steps for megacore
        if want_c > 1 and C >= want_c:
            tC = max(1, min(tC, C // want_c))
    grid = (_cdiv(C, tC), _cdiv(N, tN))

    def kernel(x_ref, o_ref):
        o_ref[...] = jnp.swapaxes(x_ref[...], 0, 1)

    return pl.pallas_call(
        kernel,
        out_shape=jax.ShapeDtypeStruct((C, N, H, W), x.dtype),
        grid=grid,
        in_specs=[pl.BlockSpec((tN, tC, H, W), lambda i, j: (j, i, 0, 0))],
        out_specs=pl.BlockSpec((tC, tN, H, W), lambda i, j: (i, j, 0, 0)),
        compiler_params=pltpu.CompilerParams(
            dimension_semantics=("parallel", "parallel"),
            vmem_limit_bytes=vmem_limit,
        ),
        cost_estimate=_cost(x),
    )(x)


def _generic_permute(x, perm, buf_budget, vmem_limit, vmem_budget_bytes):
    """Gridded fallback for non-cyclic permutations."""
    out_shape = tuple(x.shape[p] for p in perm)
    itemsize = x.dtype.itemsize
    cost = _cost(x)

    cands = [ai for ai in (0, 1) if perm.index(ai) in (0, 1)]
    if not cands:
        # Both leading output axes come from trailing input axes (e.g.
        # (3,2,1,0)): no shared leading axis to slice on.  Decompose into two
        # tiled passes: a cyclic rotation by two, then a sliceable permutation.
        q = (2, 3, 0, 1)
        qinv = tuple(q.index(i) for i in range(4))
        r = tuple(qinv[p] for p in perm)                  # q[r[i]] == perm[i]
        y = permute_channels_pallas(x, q, vmem_budget_bytes=vmem_budget_bytes)
        return permute_channels_pallas(y, r, vmem_budget_bytes=vmem_budget_bytes)

    ai = max(cands, key=lambda c: x.shape[c])   # bigger extent -> more steps
    k = perm.index(ai)
    M = x.shape[ai]
    rest = x.size // M
    max_elems = max(1, buf_budget // (_STEP_FACTOR * itemsize))
    ti = max(1, min(M, max_elems // rest)) if rest <= max_elems else 1
    # TODO(synk): if even a single slice (ti == 1) exceeds the VMEM budget, a
    # second axis should also be tiled; left as-is for this rarely-hit fallback.
    if x.size * itemsize > _TINY_BYTES:
        ti = min(ti, max(1, M // min(_MIN_STEPS, M)))   # keep parallel steps

    in_block = tuple(ti if d == ai else x.shape[d] for d in range(4))
    out_block = tuple(ti if d == k else out_shape[d] for d in range(4))
    in_map = lambda g: tuple(g if d == ai else 0 for d in range(4))
    out_map = lambda g: tuple(g if d == k else 0 for d in range(4))

    def kernel(x_ref, o_ref):
        o_ref[...] = jnp.transpose(x_ref[...], perm)

    return pl.pallas_call(
        kernel,
        out_shape=jax.ShapeDtypeStruct(out_shape, x.dtype),
        grid=(_cdiv(M, ti),),
        in_specs=[pl.BlockSpec(in_block, in_map)],
        out_specs=pl.BlockSpec(out_block, out_map),
        compiler_params=pltpu.CompilerParams(
            dimension_semantics=("parallel",),
            vmem_limit_bytes=vmem_limit,
        ),
        cost_estimate=cost,
    )(x)


def permute_channels_pallas(x, perm, *, vmem_budget_bytes=None):
    """torch.permute(x, perm) for 4-D x, as Pallas TPU kernels."""
    perm = tuple(int(p) for p in perm)
    assert x.ndim == 4 and sorted(perm) == [0, 1, 2, 3]

    if perm == (0, 1, 2, 3):
        return x                        # identity: no data movement needed

    buf_budget, vmem_limit = _vmem_params(vmem_budget_bytes)

    r = _rotation_split(perm)
    if r is not None:                   # batch-moving cyclic rotation, e.g. (2,3,0,1)
        return _rotation_permute(x, split=r, batched=False,
                                 buf_budget=buf_budget, vmem_limit=vmem_limit)

    if perm[0] == 0:
        inner = tuple(p - 1 for p in perm[1:])
        ir = _rotation_split(inner)
        if ir is not None and ir > 0:   # (0,2,3,1) [NCHW->NHWC] or (0,3,1,2)
            return _rotation_permute(x, split=1 + ir, batched=True,
                                     buf_budget=buf_budget, vmem_limit=vmem_limit)

    if perm == (1, 0, 2, 3):            # only the two leading axes swap
        return _leading_permute_swap(x, buf_budget, vmem_limit)

    return _generic_permute(x, perm, buf_budget, vmem_limit, vmem_budget_bytes)


if __name__ == "__main__":
    key = jax.random.PRNGKey(0)
    keys = jax.random.split(key, 6)

    def check(x, perm, **kw):
        out = jax.block_until_ready(permute_channels_pallas(x, perm, **kw))
        ref = jnp.transpose(x, perm)
        assert out.shape == ref.shape and out.dtype == ref.dtype, (out.shape, ref.shape)
        assert bool(jnp.array_equal(out, ref)), f"mismatch for perm={perm}, shape={x.shape}"

    # Canonical module usage: permute_channels(0, 2, 3, 1) on an NCHW tensor.
    x_small = jax.random.normal(keys[0], (2, 4, 16, 16), dtype=jnp.float32)
    check(x_small, (0, 2, 3, 1))     # NCHW -> NHWC (tiny single-step path)
    check(x_small, (0, 3, 1, 2))     # inverse direction
    check(x_small, (2, 3, 0, 1))     # batch-moving cyclic rotation
    check(x_small, (1, 0, 2, 3))     # leading-axes swap
    check(x_small, (0, 1, 2, 3))     # identity (no kernel launched)
    check(x_small, (0, 1, 3, 2))     # generic gridded fallback
    check(x_small, (3, 2, 0, 1))     # two-pass decomposition fallback

    # Larger inputs exercise the tiled, pipelined paths; the explicit small
    # budgets force multi-step grids so the B0 / lead / a-axis tilings are hit.
    x1 = jax.random.normal(keys[1], (1, 128, 32, 128), dtype=jnp.float32)   # 2 MiB
    check(x1, (0, 2, 3, 1), vmem_budget_bytes=2 << 20)   # wide branch, t0 tiling

    x2 = jax.random.normal(keys[2], (1, 16, 32, 512), dtype=jnp.float32)    # 1 MiB
    check(x2, (0, 3, 1, 2), vmem_budget_bytes=1 << 20)   # bR==1 branch

    x3 = jax.random.normal(keys[3], (32, 64, 12, 12), dtype=jnp.float32)    # ~1.1 MiB
    check(x3, (0, 2, 3, 1), vmem_budget_bytes=1 << 20)   # merge branch + lead batching

    x4 = jax.random.normal(keys[4], (1, 2048, 16, 7), dtype=jnp.float32)    # ~0.9 MiB
    check(x4, (0, 2, 3, 1), vmem_budget_bytes=1 << 20)   # a-axis-tiled deep fallback

    x5 = jax.random.normal(keys[5], (16, 64, 16, 16), dtype=jnp.float32)    # 1 MiB
    check(x5, (1, 0, 2, 3), vmem_budget_bytes=1 << 20)   # coarse-tiled leading swap

    print("KERNEL_OK")
</pallas_src>

<mosaic_0001>
module attributes {stable_mosaic.version = 11 : i64} {
  func.func @tiny_kernel(%arg0: memref<2x4x256xf32, #tpu.memory_space<vmem>>, %arg1: memref<2x256x4xf32, #tpu.memory_space<vmem>>) attributes {dimension_semantics = [], scalar_prefetch = 0 : i64, scratch_operands = 0 : i64, tpu.core_type = #tpu.core_type<tc>} {
    %c0 = arith.constant 0 : index
    %c0_0 = arith.constant 0 : index
    %c0_1 = arith.constant 0 : index
    %0 = vector.load %arg0[%c0, %c0_0, %c0_1] : memref<2x4x256xf32, #tpu.memory_space<vmem>>, vector<2x4x256xf32>
    %1 = tpu.transpose %0, [0, 2, 1] : vector<2x4x256xf32> -> vector<2x256x4xf32>
    %c0_2 = arith.constant 0 : index
    %c0_3 = arith.constant 0 : index
    %c0_4 = arith.constant 0 : index
    %2 = vector.load %arg1[%c0_2, %c0_3, %c0_4] : memref<2x256x4xf32, #tpu.memory_space<vmem>>, vector<2x256x4xf32>
    tpu.vector_store %arg1[%c0_2, %c0_3, %c0_4], %1 {strides = array<i32>} : memref<2x256x4xf32, #tpu.memory_space<vmem>>, vector<2x256x4xf32>,
    return
  }
}

</mosaic_0001>

<llo_original>
// kernel: tpu_custom_call.1
$region0: #{tpu_custom_call.1}
  #allocation0 [shape = 'u32[]', space=smem, size = 0x4, offset = 0x4, fixed_abs, tag = 'smem constant byte address 0x4 - core index']
  #allocation1 [shape = 'u32[72,128]{1,0:T(1,128)}', space=vmem, size = 0x9000, scoped, tag = 'internal scratch']
  %s0 = inlined_call_operand.hbm [shape: f32[2,4,256], index: 0, kind: input, shape index: {}]
  %s1 = inlined_call_operand.vmem [shape: f32[2,256,4], index: 1, kind: output, shape index: {}]
  %s2 = sld [smem:[#allocation0]]
  $region18: #{tpu_custom_call.1} parent=0
    _
  %s4 = ssub.s32 1, %s2
  %s5 = scalar_select 0, %s4, %s2
  $region1: #{tpu_custom_call.1} parent=0
    #allocation2 [shape = 'u8[8192]{0}', space=vmem, size = 0x2000, scoped, tag = 'input window, operand 0, single buffered']
    #allocation3 [shape = 's32[1]{0}', space=sflag, size = 0x4, scoped, tag = 'scoped memory for tpu_custom_call.1']
    %6 = vsyncpa [#allocation3], 0
    // Predicated region
    $region2: #{tpu_custom_call.1} parent=1 // pred_check
      _
    $region3: #{tpu_custom_call.1} parent=1 // pred_check_branch
      %8 = sbr.rel (0) target = $region5
    $region4: #{tpu_custom_call.1} parent=1 // pred_region
      %10 = vsyncadd [#allocation3], 0
      %s11 = sshll.u32 %s0, 4
      %s12 = int_to_ptr.hbm [resolvable:$true] %s11
      %s13 = sshll.u32 [#allocation2], 4
      %s14 = int_to_ptr.vmem [resolvable:$true] %s13
      %19 = dma.hbm_to_vmem [thread:$0]  %s12, 256, %s14, [#allocation3], 128, 128, 8
    $region5: #{tpu_custom_call.1} parent=1 // pred_fallthru
      _
    // Predicated region
    $region6: #{tpu_custom_call.1} parent=1 // pred_check
      _
    $region7: #{tpu_custom_call.1} parent=1 // pred_check_branch
      %21 = sbr.rel (0) target = $region9
    $region8: #{tpu_custom_call.1} parent=1 // pred_region
      %23 = dma.done [#allocation3], 256
    $region9: #{tpu_custom_call.1} parent=1 // pred_fallthru
      _
    %v24 = vld [vmem:[#allocation2] sm:$0xff]
    %v25 = vld [vmem:[#allocation2 + $0x8] sm:$0xff]
    %28 = vst [vmem:[#allocation1] ss:$2 sm:$0xff] %v24
    %v29 = vld.sshfl [vmem:[#allocation1] sm:$0xff pattern:$0x75316420]
    %v30 = vld.sshfl [vmem:[#allocation1 + $0x8] sm:$0xff pattern:$0x75316420]
    %s31 = scalar_lea.vmem [#allocation1], 16
    %32 = vst [vmem:[%s31] ss:$2 sm:$0xff] %v25
    %v33 = vld.sshfl [vmem:[#allocation1 + $0x10] sm:$0xff pattern:$0x75316420]
    %v34 = vld.sshfl [vmem:[#allocation1 + $0x18] sm:$0xff pattern:$0x75316420]
    %39 = vxpose.xlu0.b32.start [1/16] %v29, 128
    %40 = vxpose.xlu0.b32.cont [2/16] 0.0, 128
    %41 = vxpose.xlu0.b32.cont [3/16] 0.0, 128
    %42 = vxpose.xlu0.b32.cont [4/16] 0.0, 128
    %43 = vxpose.xlu0.b32.cont [5/16] 0.0, 128
    %44 = vxpose.xlu0.b32.cont [6/16] 0.0, 128
    %45 = vxpose.xlu0.b32.cont [7/16] 0.0, 128
    %46 = vxpose.xlu0.b32.cont [8/16] 0.0, 128
    %47 = vxpose.xlu0.b32.cont [9/16] 0.0, 128
    %48 = vxpose.xlu0.b32.cont [10/16] 0.0, 128
    %49 = vxpose.xlu0.b32.cont [11/16] 0.0, 128
    %50 = vxpose.xlu0.b32.cont [12/16] 0.0, 128
    %51 = vxpose.xlu0.b32.cont [13/16] 0.0, 128
    %52 = vxpose.xlu0.b32.cont [14/16] 0.0, 128
    %53 = vxpose.xlu0.b32.cont [15/16] 0.0, 128
    %54 = vxpose.xlu0.b32.end [16/16] 0.0, 128
    %v55 = vpop.trf.xlu0
    %v56 = vpop.trf.xlu0
    %v57 = vpop.trf.xlu0
    %v58 = vpop.trf.xlu0
    %v59 = vpop.trf.xlu0
    %v60 = vpop.trf.xlu0
    %v61 = vpop.trf.xlu0
    %v62 = vpop.trf.xlu0
    %v63 = vpop.trf.xlu0
    %v64 = vpop.trf.xlu0
    %v65 = vpop.trf.xlu0
    %v66 = vpop.trf.xlu0
    %v67 = vpop.trf.xlu0
    %v68 = vpop.trf.xlu0
    %v69 = vpop.trf.xlu0
    %v70 = vpop.trf.xlu0
    %71 = vxpose.xlu0.b32.start [1/16] %v30, 128
    %72 = vxpose.xlu0.b32.cont [2/16] 0.0, 128
    %73 = vxpose.xlu0.b32.cont [3/16] 0.0, 128
    %74 = vxpose.xlu0.b32.cont [4/16] 0.0, 128
    %75 = vxpose.xlu0.b32.cont [5/16] 0.0, 128
    %76 = vxpose.xlu0.b32.cont [6/16] 0.0, 128
    %77 = vxpose.xlu0.b32.cont [7/16] 0.0, 128
    %78 = vxpose.xlu0.b32.cont [8/16] 0.0, 128
    %79 = vxpose.xlu0.b32.cont [9/16] 0.0, 128
    %80 = vxpose.xlu0.b32.cont [10/16] 0.0, 128
    %81 = vxpose.xlu0.b32.cont [11/16] 0.0, 128
    %82 = vxpose.xlu0.b32.cont [12/16] 0.0, 128
    %83 = vxpose.xlu0.b32.cont [13/16] 0.0, 128
    %84 = vxpose.xlu0.b32.cont [14/16] 0.0, 128
    %85 = vxpose.xlu0.b32.cont [15/16] 0.0, 128
    %86 = vxpose.xlu0.b32.end [16/16] 0.0, 128
    %v87 = vpop.trf.xlu0
    %v88 = vpop.trf.xlu0
    %v89 = vpop.trf.xlu0
    %v90 = vpop.trf.xlu0
    %v91 = vpop.trf.xlu0
    %v92 = vpop.trf.xlu0
    %v93 = vpop.trf.xlu0
    %v94 = vpop.trf.xlu0
    %v95 = vpop.trf.xlu0
    %v96 = vpop.trf.xlu0
    %v97 = vpop.trf.xlu0
    %v98 = vpop.trf.xlu0
    %v99 = vpop.trf.xlu0
    %v100 = vpop.trf.xlu0
    %v101 = vpop.trf.xlu0
    %v102 = vpop.trf.xlu0
    %103 = vxpose.xlu0.b32.start [1/16] %v33, 128
    %104 = vxpose.xlu0.b32.cont [2/16] 0.0, 128
    %105 = vxpose.xlu0.b32.cont [3/16] 0.0, 128
    %106 = vxpose.xlu0.b32.cont [4/16] 0.0, 128
    %107 = vxpose.xlu0.b32.cont [5/16] 0.0, 128
    %108 = vxpose.xlu0.b32.cont [6/16] 0.0, 128
    %109 = vxpose.xlu0.b32.cont [7/16] 0.0, 128
    %110 = vxpose.xlu0.b32.cont [8/16] 0.0, 128
    %111 = vxpose.xlu0.b32.cont [9/16] 0.0, 128
    %112 = vxpose.xlu0.b32.cont [10/16] 0.0, 128
    %113 = vxpose.xlu0.b32.cont [11/16] 0.0, 128
    %114 = vxpose.xlu0.b32.cont [12/16] 0.0, 128
    %115 = vxpose.xlu0.b32.cont [13/16] 0.0, 128
    %116 = vxpose.xlu0.b32.cont [14/16] 0.0, 128
    %117 = vxpose.xlu0.b32.cont [15/16] 0.0, 128
    %118 = vxpose.xlu0.b32.end [16/16] 0.0, 128
    %v119 = vpop.trf.xlu0
    %v120 = vpop.trf.xlu0
    %v121 = vpop.trf.xlu0
    %v122 = vpop.trf.xlu0
    %v123 = vpop.trf.xlu0
    %v124 = vpop.trf.xlu0
    %v125 = vpop.trf.xlu0
    %v126 = vpop.trf.xlu0
    %v127 = vpop.trf.xlu0
    %v128 = vpop.trf.xlu0
    %v129 = vpop.trf.xlu0
    %v130 = vpop.trf.xlu0
    %v131 = vpop.trf.xlu0
    %v132 = vpop.trf.xlu0
    %v133 = vpop.trf.xlu0
    %v134 = vpop.trf.xlu0
    %135 = vxpose.xlu0.b32.start [1/16] %v34, 128
    %136 = vxpose.xlu0.b32.cont [2/16] 0.0, 128
    %137 = vxpose.xlu0.b32.cont [3/16] 0.0, 128
    %138 = vxpose.xlu0.b32.cont [4/16] 0.0, 128
    %139 = vxpose.xlu0.b32.cont [5/16] 0.0, 128
    %140 = vxpose.xlu0.b32.cont [6/16] 0.0, 128
    %141 = vxpose.xlu0.b32.cont [7/16] 0.0, 128
    %142 = vxpose.xlu0.b32.cont [8/16] 0.0, 128
    %143 = vxpose.xlu0.b32.cont [9/16] 0.0, 128
    %144 = vxpose.xlu0.b32.cont [10/16] 0.0, 128
    %145 = vxpose.xlu0.b32.cont [11/16] 0.0, 128
    %146 = vxpose.xlu0.b32.cont [12/16] 0.0, 128
    %147 = vxpose.xlu0.b32.cont [13/16] 0.0, 128
    %148 = vxpose.xlu0.b32.cont [14/16] 0.0, 128
    %149 = vxpose.xlu0.b32.cont [15/16] 0.0, 128
    %150 = vxpose.xlu0.b32.end [16/16] 0.0, 128
    %v151 = vpop.trf.xlu0
    %v152 = vpop.trf.xlu0
    %v153 = vpop.trf.xlu0
    %v154 = vpop.trf.xlu0
    %v155 = vpop.trf.xlu0
    %v156 = vpop.trf.xlu0
    %v157 = vpop.trf.xlu0
    %v158 = vpop.trf.xlu0
    %v159 = vpop.trf.xlu0
    %v160 = vpop.trf.xlu0
    %v161 = vpop.trf.xlu0
    %v162 = vpop.trf.xlu0
    %v163 = vpop.trf.xlu0
    %v164 = vpop.trf.xlu0
    %v165 = vpop.trf.xlu0
    %v166 = vpop.trf.xlu0
    %vm167 = vcmask 31744
    %168 = vst.msk [vmem:[%s1] sm:$0xff] %vm167, %v55
    %169 = vst.msk [vmem:[%s1 + $0x8] sm:$0xff] %vm167, %v56
    %170 = vst.msk [vmem:[%s1 + $0x10] sm:$0xff] %vm167, %v57
    %171 = vst.msk [vmem:[%s1 + $0x18] sm:$0xff] %vm167, %v58
    %172 = vst.msk [vmem:[%s1 + $0x20] sm:$0xff] %vm167, %v59
    %173 = vst.msk [vmem:[%s1 + $0x28] sm:$0xff] %vm167, %v60
    %174 = vst.msk [vmem:[%s1 + $0x30] sm:$0xff] %vm167, %v61
    %175 = vst.msk [vmem:[%s1 + $0x38] sm:$0xff] %vm167, %v62
    %176 = vst.msk [vmem:[%s1 + $0x40] sm:$0xff] %vm167, %v63
    %177 = vst.msk [vmem:[%s1 + $0x48] sm:$0xff] %vm167, %v64
    %178 = vst.msk [vmem:[%s1 + $0x50] sm:$0xff] %vm167, %v65
    %179 = vst.msk [vmem:[%s1 + $0x58] sm:$0xff] %vm167, %v66
    %180 = vst.msk [vmem:[%s1 + $0x60] sm:$0xff] %vm167, %v67
    %181 = vst.msk [vmem:[%s1 + $0x68] sm:$0xff] %vm167, %v68
    %182 = vst.msk [vmem:[%s1 + $0x70] sm:$0xff] %vm167, %v69
    %183 = vst.msk [vmem:[%s1 + $0x78] sm:$0xff] %vm167, %v70
    %184 = vst.msk [vmem:[%s1 + $0x80] sm:$0xff] %vm167, %v87
    %185 = vst.msk [vmem:[%s1 + $0x88] sm:$0xff] %vm167, %v88
    %186 = vst.msk [vmem:[%s1 + $0x90] sm:$0xff] %vm167, %v89
    %187 = vst.msk [vmem:[%s1 + $0x98] sm:$0xff] %vm167, %v90
    %188 = vst.msk [vmem:[%s1 + $0xa0] sm:$0xff] %vm167, %v91
    %189 = vst.msk [vmem:[%s1 + $0xa8] sm:$0xff] %vm167, %v92
    %190 = vst.msk [vmem:[%s1 + $0xb0] sm:$0xff] %vm167, %v93
    %191 = vst.msk [vmem:[%s1 + $0xb8] sm:$0xff] %vm167, %v94
    %192 = vst.msk [vmem:[%s1 + $0xc0] sm:$0xff] %vm167, %v95
    %193 = vst.msk [vmem:[%s1 + $0xc8] sm:$0xff] %vm167, %v96
    %194 = vst.msk [vmem:[%s1 + $0xd0] sm:$0xff] %vm167, %v97
    %195 = vst.msk [vmem:[%s1 + $0xd8] sm:$0xff] %vm167, %v98
    %196 = vst.msk [vmem:[%s1 + $0xe0] sm:$0xff] %vm167, %v99
    %197 = vst.msk [vmem:[%s1 + $0xe8] sm:$0xff] %vm167, %v100
    %198 = vst.msk [vmem:[%s1 + $0xf0] sm:$0xff] %vm167, %v101
    %199 = vst.msk [vmem:[%s1 + $0xf8] sm:$0xff] %vm167, %v102
    %200 = vst.msk [vmem:[%s1 + $0x100] sm:$0xff] %vm167, %v119
    %201 = vst.msk [vmem:[%s1 + $0x108] sm:$0xff] %vm167, %v120
    %202 = vst.msk [vmem:[%s1 + $0x110] sm:$0xff] %vm167, %v121
    %203 = vst.msk [vmem:[%s1 + $0x118] sm:$0xff] %vm167, %v122
    %204 = vst.msk [vmem:[%s1 + $0x120] sm:$0xff] %vm167, %v123
    %205 = vst.msk [vmem:[%s1 + $0x128] sm:$0xff] %vm167, %v124
    %206 = vst.msk [vmem:[%s1 + $0x130] sm:$0xff] %vm167, %v125
    %207 = vst.msk [vmem:[%s1 + $0x138] sm:$0xff] %vm167, %v126
    %208 = vst.msk [vmem:[%s1 + $0x140] sm:$0xff] %vm167, %v127
    %209 = vst.msk [vmem:[%s1 + $0x148] sm:$0xff] %vm167, %v128
    %210 = vst.msk [vmem:[%s1 + $0x150] sm:$0xff] %vm167, %v129
    %211 = vst.msk [vmem:[%s1 + $0x158] sm:$0xff] %vm167, %v130
    %212 = vst.msk [vmem:[%s1 + $0x160] sm:$0xff] %vm167, %v131
    %213 = vst.msk [vmem:[%s1 + $0x168] sm:$0xff] %vm167, %v132
    %214 = vst.msk [vmem:[%s1 + $0x170] sm:$0xff] %vm167, %v133
    %215 = vst.msk [vmem:[%s1 + $0x178] sm:$0xff] %vm167, %v134
    %216 = vst.msk [vmem:[%s1 + $0x180] sm:$0xff] %vm167, %v151
    %217 = vst.msk [vmem:[%s1 + $0x188] sm:$0xff] %vm167, %v152
    %218 = vst.msk [vmem:[%s1 + $0x190] sm:$0xff] %vm167, %v153
    %219 = vst.msk [vmem:[%s1 + $0x198] sm:$0xff] %vm167, %v154
    %220 = vst.msk [vmem:[%s1 + $0x1a0] sm:$0xff] %vm167, %v155
    %221 = vst.msk [vmem:[%s1 + $0x1a8] sm:$0xff] %vm167, %v156
    %222 = vst.msk [vmem:[%s1 + $0x1b0] sm:$0xff] %vm167, %v157
    %223 = vst.msk [vmem:[%s1 + $0x1b8] sm:$0xff] %vm167, %v158
    %224 = vst.msk [vmem:[%s1 + $0x1c0] sm:$0xff] %vm167, %v159
    %225 = vst.msk [vmem:[%s1 + $0x1c8] sm:$0xff] %vm167, %v160
    %226 = vst.msk [vmem:[%s1 + $0x1d0] sm:$0xff] %vm167, %v161
    %227 = vst.msk [vmem:[%s1 + $0x1d8] sm:$0xff] %vm167, %v162
    %228 = vst.msk [vmem:[%s1 + $0x1e0] sm:$0xff] %vm167, %v163
    %229 = vst.msk [vmem:[%s1 + $0x1e8] sm:$0xff] %vm167, %v164
    %230 = vst.msk [vmem:[%s1 + $0x1f0] sm:$0xff] %vm167, %v165
    %231 = vst.msk [vmem:[%s1 + $0x1f8] sm:$0xff] %vm167, %v166
    // Predicated region
    $region10: #{tpu_custom_call.1} parent=1 // pred_check
      _
    $region11: #{tpu_custom_call.1} parent=1 // pred_check_branch
      %233 = sbr.rel (0) target = $region13
    $region12: #{tpu_custom_call.1} parent=1 // pred_region
      _
    $region13: #{tpu_custom_call.1} parent=1 // pred_fallthru
      _
    // Predicated region
    $region14: #{tpu_custom_call.1} parent=1 // pred_check
      _
    $region15: #{tpu_custom_call.1} parent=1 // pred_check_branch
      %235 = sbr.rel (0) target = $region17
    $region16: #{tpu_custom_call.1} parent=1 // pred_region
      _
    $region17: #{tpu_custom_call.1} parent=1 // pred_fallthru
      _
    %236 = vsyncpa [#allocation3], 1

</llo_original>
